<compile_context>
chip_gen: v7x
topology: tpu7x:2x2x1
jax: 0.10.0
libtpu: 0.0.40
codegen_flags: <defaults>
</compile_context>

<pallas_src>
import functools

import jax
import jax.numpy as jnp
from jax.experimental import pallas as pl
from jax.experimental.pallas import tpu as pltpu


def _round_up(x, m):
    return (x + m - 1) // m * m


def _mmd_kernel(zi_ref, zjt_ref, sqi_ref, sqj_ref, ci_ref, cj_ref, o_ref,
                acc_ref, *, exp_scale, pow2_exponents, multipliers):
    i = pl.program_id(0)
    j = pl.program_id(1)

    @pl.when(j == 0)
    def _():
        acc_ref[...] = jnp.zeros_like(acc_ref)

    # Symmetry: K is symmetric and we only need c^T K c, so skip lower-triangle
    # block tiles entirely and double-count the strict upper-triangle ones.
    @pl.when(j >= i)
    def _():
        zi = zi_ref[...]                                   # (T, Dp)
        zjt = zjt_ref[...]                                 # (Dp, T)
        # Rows were pre-scaled by 1/sqrt(bandwidth) -> l2 is already L2 / bw.
        g = jnp.dot(zi, zjt, preferred_element_type=jnp.float32)   # MXU (T, T)
        l2 = jnp.maximum(sqi_ref[...] + sqj_ref[...] - 2.0 * g, 0.0)

        if pow2_exponents is not None:
            # One EUP exp, then repeated squaring on the VPU:
            #   exp(-L2/(bw*m_k)) = base ** (m_max/m_k), ratios are powers of 2.
            base = jnp.exp(l2 * jnp.float32(-exp_scale))
            ksum = jnp.zeros_like(l2)
            t = base
            p = 1
            max_e = max(pow2_exponents)
            while True:
                cnt = pow2_exponents.count(p)
                if cnt == 1:
                    ksum = ksum + t
                elif cnt > 1:
                    ksum = ksum + jnp.float32(cnt) * t
                if p >= max_e:
                    break
                t = t * t
                p *= 2
        else:
            # Fallback: multipliers are not a power-of-two ladder.
            ksum = jnp.zeros_like(l2)
            for m in multipliers:
                ksum = ksum + jnp.exp(l2 * jnp.float32(-1.0 / m))

        factor = jnp.where(j == i, jnp.float32(1.0), jnp.float32(2.0))
        # Lane-dense elementwise accumulate; ci and the cross-lane reduce are
        # deferred to the final j step (keeps the hot loop off the XLU and off
        # narrow masked stores).
        acc_ref[...] += (factor * ksum) * cj_ref[...]

    @pl.when(j == pl.num_programs(1) - 1)
    def _():
        o_ref[...] = ci_ref[...] * jnp.sum(acc_ref[...], axis=1, keepdims=True)


def mmd_loss(X, Y, *, n_kernels=5, mul_factor=2.0, bandwidth=None,
             weight=1.0, max_tile=256, gram_dtype=jnp.float32):
    Nx, D = X.shape
    Ny, _ = Y.shape
    n = Nx + Ny

    Z = jnp.concatenate([X, Y], axis=0).astype(jnp.float32)      # (n, D)

    # Bandwidth = sum(L2) / (n^2 - n) via the exact O(n*D) closed form
    #   sum_ij ||zi - zj||^2 = 2*n*sum_i||zi||^2 - 2*||sum_i zi||^2
    if bandwidth is None:
        sq_full = jnp.sum(Z * Z, axis=-1)
        col_sum = jnp.sum(Z, axis=0)
        l2_total = 2.0 * n * jnp.sum(sq_full) - 2.0 * jnp.dot(col_sum, col_sum)
        bw = l2_total / float(n * n - n)
    else:
        bw = jnp.asarray(bandwidth, jnp.float32)

    multipliers = tuple(float(mul_factor ** (k - n_kernels // 2))
                        for k in range(n_kernels))
    m_max = max(multipliers)
    exp_scale = 1.0 / m_max

    # Detect the power-of-two-ladder case (default mul_factor=2): enables the
    # single-exp + repeated-squaring path.
    pow2_exponents = []
    for m in multipliers:
        e = m_max / m
        r = int(round(e))
        if r < 1 or abs(e - r) > 1e-6 * max(1.0, r) or (r & (r - 1)) != 0:
            pow2_exponents = None
            break
        pow2_exponents.append(r)
    if pow2_exponents is not None:
        pow2_exponents = tuple(pow2_exponents)

    # Pre-scale rows so the kernel works directly with L2 / bandwidth.
    Zs = Z * jax.lax.rsqrt(bw.astype(jnp.float32))

    # Lane/sublane-aligned zero padding (padded rows get c = 0 below).
    n_pad = max(_round_up(n, 128), 128)
    d_pad = max(_round_up(D, 128), 128)

    # Square tile (symmetry skipping works at block granularity), largest that
    # divides n_pad, capped; keep >= 2 i blocks when possible so v7x's second
    # TensorCore has work.
    tile = 128
    for cand in (256, 512):
        if cand <= max_tile and n_pad % cand == 0:
            tile = cand
    while tile > 128 and n_pad // tile < 2:
        tile //= 2

    Zp = jnp.zeros((n_pad, d_pad), jnp.float32).at[:n, :D].set(Zs)

    sq = jnp.sum(Zp * Zp, axis=-1)                        # (n_pad,) f32
    c = jnp.concatenate([
        jnp.full((Nx,), 1.0 / Nx, jnp.float32),
        jnp.full((Ny,), -1.0 / Ny, jnp.float32),
        jnp.zeros((n_pad - n,), jnp.float32),
    ])

    # Gram operands. gram_dtype=jnp.bfloat16 trades ~0.5% K-entry accuracy for
    # MXU throughput / halved Z streams on v6e/v7x (keep sq/exp/accum in f32);
    # default f32 to hold the 1e-3 validation tolerance.
    Zg = Zp.astype(gram_dtype)
    Ztg = Zg.T                                            # (d_pad, n_pad)

    sq_col = sq.reshape(n_pad, 1)
    sq_row = sq.reshape(1, n_pad)
    c_col = c.reshape(n_pad, 1)
    c_row = c.reshape(1, n_pad)

    gi = n_pad // tile
    grid = (gi, gi)

    # VMEM budget: double-buffered Z blocks + (tile, tile) intermediates.
    elt = jnp.dtype(gram_dtype).itemsize
    est = (2 * 2 * tile * d_pad * elt        # zi + zjT, double buffered
           + 4 * tile * tile * 4             # acc scratch + live temps
           + 16 * tile * 4)                  # vectors + output
    vmem_limit = int(min(max(2 * est, 32 << 20), 48 << 20))
    # TODO(synk): for very large D (d_pad >~ 4-8k) add a third grid axis over D
    # chunks with a Gram accumulator so tiles stay under v7x's 64 MiB VMEM.

    computed_tiles = gi * (gi + 1) // 2
    tile_elems = tile * tile
    n_exp = 1 if pow2_exponents is not None else n_kernels
    flops = computed_tiles * (2 * tile_elems * d_pad + 16 * tile_elems)
    transcendentals = computed_tiles * tile_elems * n_exp
    bytes_accessed = (n_pad * d_pad * elt            # zi: once per i block
                      + gi * n_pad * d_pad * elt     # zjT: per (i, j) tile row
                      + 4 * 4 * n_pad * gi           # sq/c vectors
                      + 4 * n_pad)                   # output

    partial = pl.pallas_call(
        functools.partial(_mmd_kernel,
                          exp_scale=exp_scale,
                          pow2_exponents=pow2_exponents,
                          multipliers=multipliers),
        out_shape=jax.ShapeDtypeStruct((n_pad, 1), jnp.float32),
        grid=grid,
        in_specs=[
            pl.BlockSpec((tile, d_pad), lambda i, j: (i, 0)),   # Z rows (i tile)
            pl.BlockSpec((d_pad, tile), lambda i, j: (0, j)),   # Z^T cols (j tile)
            pl.BlockSpec((tile, 1), lambda i, j: (i, 0)),       # ||z_i||^2
            pl.BlockSpec((1, tile), lambda i, j: (0, j)),       # ||z_j||^2
            pl.BlockSpec((tile, 1), lambda i, j: (i, 0)),       # c_i
            pl.BlockSpec((1, tile), lambda i, j: (0, j)),       # c_j
        ],
        out_specs=pl.BlockSpec((tile, 1), lambda i, j: (i, 0)),
        scratch_shapes=[pltpu.VMEM((tile, tile), jnp.float32)],
        compiler_params=pltpu.CompilerParams(
            dimension_semantics=("parallel", "arbitrary"),
            vmem_limit_bytes=vmem_limit),
        cost_estimate=pl.CostEstimate(
            flops=int(flops), transcendentals=int(transcendentals),
            bytes_accessed=int(bytes_accessed)),
    )(Zg, Ztg, sq_col, sq_row, c_col, c_row)

    return jnp.sum(partial) * weight


def mmd_ref(X, Y, *, n_kernels=5, mul_factor=2.0, bandwidth=None, weight=1.0):
    """Plain-JAX reference mirroring the PyTorch module."""
    Z = jnp.concatenate([X, Y], axis=0)
    diff = Z[:, None, :] - Z[None, :, :]
    L2 = jnp.sum(diff * diff, axis=-1)
    n = Z.shape[0]
    bw = L2.sum() / (n * n - n) if bandwidth is None else bandwidth
    mults = mul_factor ** (jnp.arange(n_kernels) - n_kernels // 2)
    K = jnp.exp(-L2[None, ...] / (bw * mults)[:, None, None]).sum(axis=0)
    Nx = X.shape[0]
    XX = K[:Nx, :Nx].mean()
    XY = K[:Nx, Nx:].mean()
    YY = K[Nx:, Nx:].mean()
    return (XX - 2.0 * XY + YY) * weight


if __name__ == "__main__":
    key = jax.random.PRNGKey(0)
    kx, ky = jax.random.split(key)
    Nx, Ny, D = 8, 8, 32
    X = jax.random.normal(kx, (Nx, D), jnp.float32)
    # Shift/scale Y so the MMD is clearly nonzero.
    Y = jax.random.normal(ky, (Ny, D), jnp.float32) * 1.5 + 0.5

    loss = jax.jit(mmd_loss)(X, Y)
    loss = jax.block_until_ready(loss)

    ref = mmd_ref(X, Y)
    assert loss.shape == ()
    assert jnp.allclose(loss, ref, rtol=1e-3, atol=1e-3), (loss, ref)
    print("KERNEL_OK")
</pallas_src>

<mosaic_0001>
module attributes {stable_mosaic.version = 11 : i64} {
  func.func @_mmd_kernel(%arg0: i32, %arg1: i32, %arg2: memref<128x128xf32, #tpu.memory_space<vmem>>, %arg3: memref<128x128xf32, #tpu.memory_space<vmem>>, %arg4: memref<128x1xf32, #tpu.memory_space<vmem>>, %arg5: memref<1x128xf32, #tpu.memory_space<vmem>>, %arg6: memref<128x1xf32, #tpu.memory_space<vmem>>, %arg7: memref<1x128xf32, #tpu.memory_space<vmem>>, %arg8: memref<128x1xf32, #tpu.memory_space<vmem>>, %arg9: memref<128x128xf32, #tpu.memory_space<vmem>>) attributes {dimension_semantics = [#tpu.dimension_semantics<parallel>, #tpu.dimension_semantics<arbitrary>], iteration_bounds = array<i64: 1, 1>, scalar_prefetch = 0 : i64, scratch_operands = 1 : i64, tpu.core_type = #tpu.core_type<tc>, window_params = [{transform_indices = @transform_0, window_bounds = array<i64: 128, 128>}, {transform_indices = @transform_1, window_bounds = array<i64: 128, 128>}, {transform_indices = @transform_2, window_bounds = array<i64: 128, 1>}, {transform_indices = @transform_3, window_bounds = array<i64: 1, 128>}, {transform_indices = @transform_4, window_bounds = array<i64: 128, 1>}, {transform_indices = @transform_5, window_bounds = array<i64: 1, 128>}, {transform_indices = @transform_6, window_bounds = array<i64: 128, 1>}]} {
    %c0_i32 = arith.constant 0 : i32
    %0 = arith.cmpi eq, %arg1, %c0_i32 : i32
    %1 = arith.extui %0 : i1 to i32
    %c0_i32_0 = arith.constant 0 : i32
    %2 = arith.cmpi ne, %1, %c0_i32_0 : i32
    scf.if %2 {
      %cst = arith.constant 0.000000e+00 : f32
      %9 = vector.broadcast %cst : f32 to vector<128x128xf32>
      %c0 = arith.constant 0 : index
      %c0_4 = arith.constant 0 : index
      %10 = vector.load %arg9[%c0, %c0_4] : memref<128x128xf32, #tpu.memory_space<vmem>>, vector<128x128xf32>
      tpu.vector_store %arg9[%c0, %c0_4], %9 {strides = array<i32>} : memref<128x128xf32, #tpu.memory_space<vmem>>, vector<128x128xf32>,
    } else {
    }
    %3 = arith.cmpi sge, %arg1, %arg0 : i32
    %4 = arith.extui %3 : i1 to i32
    %c0_i32_1 = arith.constant 0 : i32
    %5 = arith.cmpi ne, %4, %c0_i32_1 : i32
    scf.if %5 {
      %c0 = arith.constant 0 : index
      %c0_4 = arith.constant 0 : index
      %9 = vector.load %arg2[%c0, %c0_4] : memref<128x128xf32, #tpu.memory_space<vmem>>, vector<128x128xf32>
      %c0_5 = arith.constant 0 : index
      %c0_6 = arith.constant 0 : index
      %10 = vector.load %arg3[%c0_5, %c0_6] : memref<128x128xf32, #tpu.memory_space<vmem>>, vector<128x128xf32>
      %cst = arith.constant dense<0.000000e+00> : vector<128x128xf32>
      %11 = tpu.matmul %9, %10, %cst {dimension_numbers = #tpu.dot_dimension_numbers<[1], [0], [0], [1], [0, 0, 1, 1], [], []>} : vector<128x128xf32>, vector<128x128xf32>, vector<128x128xf32> -> vector<128x128xf32>
      %c0_7 = arith.constant 0 : index
      %c0_8 = arith.constant 0 : index
      %12 = vector.load %arg4[%c0_7, %c0_8] : memref<128x1xf32, #tpu.memory_space<vmem>>, vector<128x1xf32>
      %c0_9 = arith.constant 0 : index
      %c0_10 = arith.constant 0 : index
      %13 = vector.load %arg5[%c0_9, %c0_10] : memref<1x128xf32, #tpu.memory_space<vmem>>, vector<1x128xf32>
      %14 = vector.broadcast %12 : vector<128x1xf32> to vector<128x128xf32>
      %15 = vector.broadcast %13 : vector<1x128xf32> to vector<128x128xf32>
      %16 = arith.addf %14, %15 : vector<128x128xf32>
      %cst_11 = arith.constant 2.000000e+00 : f32
      %17 = vector.broadcast %cst_11 : f32 to vector<128x128xf32>
      %18 = arith.mulf %17, %11 : vector<128x128xf32>
      %19 = arith.subf %16, %18 : vector<128x128xf32>
      %cst_12 = arith.constant 0.000000e+00 : f32
      %20 = vector.broadcast %cst_12 : f32 to vector<128x128xf32>
      %21 = arith.maximumf %19, %20 : vector<128x128xf32>
      %cst_13 = arith.constant -2.500000e-01 : f32
      %22 = vector.broadcast %cst_13 : f32 to vector<128x128xf32>
      %23 = arith.mulf %21, %22 : vector<128x128xf32>
      %24 = math.exp %23 : vector<128x128xf32>
      %cst_14 = arith.constant 0.000000e+00 : f32
      %25 = vector.broadcast %cst_14 : f32 to vector<128x128xf32>
      %26 = arith.addf %25, %24 : vector<128x128xf32>
      %27 = arith.mulf %24, %24 : vector<128x128xf32>
      %28 = arith.addf %26, %27 : vector<128x128xf32>
      %29 = arith.mulf %27, %27 : vector<128x128xf32>
      %30 = arith.addf %28, %29 : vector<128x128xf32>
      %31 = arith.mulf %29, %29 : vector<128x128xf32>
      %32 = arith.addf %30, %31 : vector<128x128xf32>
      %33 = arith.mulf %31, %31 : vector<128x128xf32>
      %34 = arith.addf %32, %33 : vector<128x128xf32>
      %35 = arith.cmpi eq, %arg1, %arg0 : i32
      %cst_15 = arith.constant 1.000000e+00 : f32
      %cst_16 = arith.constant 2.000000e+00 : f32
      %36 = arith.select %35, %cst_15, %cst_16 : f32
      %c0_17 = arith.constant 0 : index
      %c0_18 = arith.constant 0 : index
      %37 = vector.load %arg9[%c0_17, %c0_18] : memref<128x128xf32, #tpu.memory_space<vmem>>, vector<128x128xf32>
      %38 = vector.broadcast %36 : f32 to vector<128x128xf32>
      %39 = arith.mulf %38, %34 : vector<128x128xf32>
      %c0_19 = arith.constant 0 : index
      %c0_20 = arith.constant 0 : index
      %40 = vector.load %arg7[%c0_19, %c0_20] : memref<1x128xf32, #tpu.memory_space<vmem>>, vector<1x128xf32>
      %41 = vector.broadcast %40 : vector<1x128xf32> to vector<128x128xf32>
      %42 = arith.mulf %39, %41 : vector<128x128xf32>
      %43 = arith.addf %37, %42 : vector<128x128xf32>
      %c0_21 = arith.constant 0 : index
      %c0_22 = arith.constant 0 : index
      %44 = vector.load %arg9[%c0_21, %c0_22] : memref<128x128xf32, #tpu.memory_space<vmem>>, vector<128x128xf32>
      tpu.vector_store %arg9[%c0_21, %c0_22], %43 {strides = array<i32>} : memref<128x128xf32, #tpu.memory_space<vmem>>, vector<128x128xf32>,
    } else {
    }
    %c0_i32_2 = arith.constant 0 : i32
    %6 = arith.cmpi eq, %arg1, %c0_i32_2 : i32
    %7 = arith.extui %6 : i1 to i32
    %c0_i32_3 = arith.constant 0 : i32
    %8 = arith.cmpi ne, %7, %c0_i32_3 : i32
    scf.if %8 {
      %c0 = arith.constant 0 : index
      %c0_4 = arith.constant 0 : index
      %9 = vector.load %arg6[%c0, %c0_4] : memref<128x1xf32, #tpu.memory_space<vmem>>, vector<128x1xf32>
      %c0_5 = arith.constant 0 : index
      %c0_6 = arith.constant 0 : index
      %10 = vector.load %arg9[%c0_5, %c0_6] : memref<128x128xf32, #tpu.memory_space<vmem>>, vector<128x128xf32>
      %cst = arith.constant dense<0.000000e+00> : vector<128xf32>
      %11 = vector.multi_reduction <add>, %10, %cst [1] : vector<128x128xf32> to vector<128xf32>
      %12 = vector.shape_cast %11 : vector<128xf32> to vector<128x1xf32>
      %13 = arith.mulf %9, %12 : vector<128x1xf32>
      %c0_7 = arith.constant 0 : index
      %c0_8 = arith.constant 0 : index
      %14 = vector.load %arg8[%c0_7, %c0_8] : memref<128x1xf32, #tpu.memory_space<vmem>>, vector<128x1xf32>
      tpu.vector_store %arg8[%c0_7, %c0_8], %13 {strides = array<i32>} : memref<128x1xf32, #tpu.memory_space<vmem>>, vector<128x1xf32>,
    } else {
    }
    return
  }
  func.func @transform_0(%arg0: i32, %arg1: i32) -> (i32, i32) {
    %c0_i32 = arith.constant 0 : i32
    %c0_i32_0 = arith.constant 0 : i32
    return %arg0, %c0_i32 : i32, i32
  }
  func.func @transform_1(%arg0: i32, %arg1: i32) -> (i32, i32) {
    %c0_i32 = arith.constant 0 : i32
    %c0_i32_0 = arith.constant 0 : i32
    return %c0_i32, %arg1 : i32, i32
  }
  func.func @transform_2(%arg0: i32, %arg1: i32) -> (i32, i32) {
    %c0_i32 = arith.constant 0 : i32
    %c0_i32_0 = arith.constant 0 : i32
    return %arg0, %c0_i32 : i32, i32
  }
  func.func @transform_3(%arg0: i32, %arg1: i32) -> (i32, i32) {
    %c0_i32 = arith.constant 0 : i32
    %c0_i32_0 = arith.constant 0 : i32
    return %c0_i32, %arg1 : i32, i32
  }
  func.func @transform_4(%arg0: i32, %arg1: i32) -> (i32, i32) {
    %c0_i32 = arith.constant 0 : i32
    %c0_i32_0 = arith.constant 0 : i32
    return %arg0, %c0_i32 : i32, i32
  }
  func.func @transform_5(%arg0: i32, %arg1: i32) -> (i32, i32) {
    %c0_i32 = arith.constant 0 : i32
    %c0_i32_0 = arith.constant 0 : i32
    return %c0_i32, %arg1 : i32, i32
  }
  func.func @transform_6(%arg0: i32, %arg1: i32) -> (i32, i32) {
    %c0_i32 = arith.constant 0 : i32
    %c0_i32_0 = arith.constant 0 : i32
    return %arg0, %c0_i32 : i32, i32
  }
}

</mosaic_0001>

<llo_original>
// kernel: mmd_loss.1
$region0: #{mmd_loss.1}
  #allocation0 [shape = 'u32[]', space=smem, size = 0x4, offset = 0x4, fixed_abs, tag = 'smem constant byte address 0x4 - core index']
  #allocation1 [shape = 'u32[144,128]{1,0:T(1,128)}', space=vmem, size = 0x12000, scoped, tag = 'internal scratch']
  #allocation2 [shape = 'f32[128,128]{1,0:T(8,128)}', space=vmem, size = 0x10000, scoped, tag = 'scratch operand']
  %s0 = inlined_call_operand.vmem [shape: f32[128,128], index: 0, kind: input, shape index: {}]
  %s1 = inlined_call_operand.vmem [shape: f32[128,128], index: 1, kind: input, shape index: {}]
  %s2 = inlined_call_operand.vmem [shape: f32[128,1], index: 2, kind: input, shape index: {}]
  %s3 = inlined_call_operand.vmem [shape: f32[1,128], index: 3, kind: input, shape index: {}]
  %s4 = inlined_call_operand.vmem [shape: f32[128,1], index: 4, kind: input, shape index: {}]
  %s5 = inlined_call_operand.vmem [shape: f32[1,128], index: 5, kind: input, shape index: {}]
  %s6 = inlined_call_operand.vmem [shape: f32[128,1], index: 6, kind: output, shape index: {}]
  %s7 = sld [smem:[#allocation0]]
  $region46: #{mmd_loss.1} parent=0
    _
  %s9 = ssub.s32 1, %s7
  %s10 = scalar_select 0, %s9, %s7
  // Predicated region
  $region2: #{mmd_loss.1} parent=0 // pred_check
    _
  $region3: #{mmd_loss.1} parent=0 // pred_check_branch
    %12 = sbr.rel (0) target = $region5
  $region4: #{mmd_loss.1} parent=0 // pred_region
    _
  $region5: #{mmd_loss.1} parent=0 // pred_fallthru
    _
  // Predicated region
  $region6: #{mmd_loss.1} parent=0 // pred_check
    _
  $region7: #{mmd_loss.1} parent=0 // pred_check_branch
    %14 = sbr.rel (0) target = $region9
  $region8: #{mmd_loss.1} parent=0 // pred_region
    _
  $region9: #{mmd_loss.1} parent=0 // pred_fallthru
    _
  // Predicated region
  $region10: #{mmd_loss.1} parent=0 // pred_check
    _
  $region11: #{mmd_loss.1} parent=0 // pred_check_branch
    %16 = sbr.rel (0) target = $region13
  $region12: #{mmd_loss.1} parent=0 // pred_region
    _
  $region13: #{mmd_loss.1} parent=0 // pred_fallthru
    _
  // Predicated region
  $region14: #{mmd_loss.1} parent=0 // pred_check
    _
  $region15: #{mmd_loss.1} parent=0 // pred_check_branch
    %18 = sbr.rel (0) target = $region17
  $region16: #{mmd_loss.1} parent=0 // pred_region
    _
  $region17: #{mmd_loss.1} parent=0 // pred_fallthru
    _
  // Predicated region
  $region18: #{mmd_loss.1} parent=0 // pred_check
    _
  $region19: #{mmd_loss.1} parent=0 // pred_check_branch
    %20 = sbr.rel (0) target = $region21
  $region20: #{mmd_loss.1} parent=0 // pred_region
    _
  $region21: #{mmd_loss.1} parent=0 // pred_fallthru
    _
  // Predicated region
  $region22: #{mmd_loss.1} parent=0 // pred_check
    _
  $region23: #{mmd_loss.1} parent=0 // pred_check_branch
    %22 = sbr.rel (0) target = $region25
  $region24: #{mmd_loss.1} parent=0 // pred_region
    _
  $region25: #{mmd_loss.1} parent=0 // pred_fallthru
    _
  %p23 = scmp.eq.s32.totalorder 0, 0
  // Predicated region
  $region26: #{mmd_loss.1} parent=0 // pred_check
    %p24 = pneg %p23
  $region27: #{mmd_loss.1} parent=0 // pred_check_branch
    %26 = sbr.rel (%p24) target = $region29
  $region28: #{mmd_loss.1} parent=0 // pred_region
    %27 = vst [vmem:[#allocation2] sm:$0xff] 0.0
    %28 = vst [vmem:[#allocation2 + $0x8] sm:$0xff] 0.0
    %29 = vst [vmem:[#allocation2 + $0x10] sm:$0xff] 0.0
    %30 = vst [vmem:[#allocation2 + $0x18] sm:$0xff] 0.0
    %31 = vst [vmem:[#allocation2 + $0x20] sm:$0xff] 0.0
    %32 = vst [vmem:[#allocation2 + $0x28] sm:$0xff] 0.0
    %33 = vst [vmem:[#allocation2 + $0x30] sm:$0xff] 0.0
    %34 = vst [vmem:[#allocation2 + $0x38] sm:$0xff] 0.0
    %35 = vst [vmem:[#allocation2 + $0x40] sm:$0xff] 0.0
    %36 = vst [vmem:[#allocation2 + $0x48] sm:$0xff] 0.0
    %37 = vst [vmem:[#allocation2 + $0x50] sm:$0xff] 0.0
    %38 = vst [vmem:[#allocation2 + $0x58] sm:$0xff] 0.0
    %39 = vst [vmem:[#allocation2 + $0x60] sm:$0xff] 0.0
    %40 = vst [vmem:[#allocation2 + $0x68] sm:$0xff] 0.0
    %41 = vst [vmem:[#allocation2 + $0x70] sm:$0xff] 0.0
    %42 = vst [vmem:[#allocation2 + $0x78] sm:$0xff] 0.0
  $region29: #{mmd_loss.1} parent=0 // pred_fallthru
    _
  %p43 = scmp.ge.s32.totalorder 0, 0
  // Predicated region
  $region30: #{mmd_loss.1} parent=0 // pred_check
    %p44 = pneg %p43
  $region31: #{mmd_loss.1} parent=0 // pred_check_branch
    %46 = sbr.rel (%p44) target = $region33
  $region32: #{mmd_loss.1} parent=0 // pred_region
    %v47 = vld [vmem:[%s0] sm:$0xff]
    %v48 = vld [vmem:[%s0 + $0x8] sm:$0xff]
    %v49 = vld [vmem:[%s0 + $0x10] sm:$0xff]
    %v50 = vld [vmem:[%s0 + $0x18] sm:$0xff]
    %v51 = vld [vmem:[%s0 + $0x20] sm:$0xff]
    %v52 = vld [vmem:[%s0 + $0x28] sm:$0xff]
    %v53 = vld [vmem:[%s0 + $0x30] sm:$0xff]
    %v54 = vld [vmem:[%s0 + $0x38] sm:$0xff]
    %v55 = vld [vmem:[%s0 + $0x40] sm:$0xff]
    %v56 = vld [vmem:[%s0 + $0x48] sm:$0xff]
    %v57 = vld [vmem:[%s0 + $0x50] sm:$0xff]
    %v58 = vld [vmem:[%s0 + $0x58] sm:$0xff]
    %v59 = vld [vmem:[%s0 + $0x60] sm:$0xff]
    %v60 = vld [vmem:[%s0 + $0x68] sm:$0xff]
    %v61 = vld [vmem:[%s0 + $0x70] sm:$0xff]
    %v62 = vld [vmem:[%s0 + $0x78] sm:$0xff]
    %v63 = vld [vmem:[%s1] sm:$0xff]
    %v64 = vld [vmem:[%s1 + $0x8] sm:$0xff]
    %v65 = vld [vmem:[%s1 + $0x10] sm:$0xff]
    %v66 = vld [vmem:[%s1 + $0x18] sm:$0xff]
    %v67 = vld [vmem:[%s1 + $0x20] sm:$0xff]
    %v68 = vld [vmem:[%s1 + $0x28] sm:$0xff]
    %v69 = vld [vmem:[%s1 + $0x30] sm:$0xff]
    %v70 = vld [vmem:[%s1 + $0x38] sm:$0xff]
    %v71 = vld [vmem:[%s1 + $0x40] sm:$0xff]
    %v72 = vld [vmem:[%s1 + $0x48] sm:$0xff]
    %v73 = vld [vmem:[%s1 + $0x50] sm:$0xff]
    %v74 = vld [vmem:[%s1 + $0x58] sm:$0xff]
    %v75 = vld [vmem:[%s1 + $0x60] sm:$0xff]
    %v76 = vld [vmem:[%s1 + $0x68] sm:$0xff]
    %v77 = vld [vmem:[%s1 + $0x70] sm:$0xff]
    %v78 = vld [vmem:[%s1 + $0x78] sm:$0xff]
    %79 = vmatprep.subr.mxu0 0.0
    %80 = vmatpush1.msra.mxu0 %v63
    %81 = vmatprep.subr.mxu0 0.0
    %82 = vmatpush1.msra.mxu0 %v64
    %83 = vmatprep.subr.mxu0 0.0
    %84 = vmatpush1.msra.mxu0 %v65
    %85 = vmatprep.subr.mxu0 0.0
    %86 = vmatpush1.msra.mxu0 %v66
    %87 = vmatprep.subr.mxu0 0.0
    %88 = vmatpush1.msra.mxu0 %v67
    %89 = vmatprep.subr.mxu0 0.0
    %90 = vmatpush1.msra.mxu0 %v68
    %91 = vmatprep.subr.mxu0 0.0
    %92 = vmatpush1.msra.mxu0 %v69
    %93 = vmatprep.subr.mxu0 0.0
    %94 = vmatpush1.msra.mxu0 %v70
    %95 = vmatprep.subr.mxu0 0.0
    %96 = vmatpush1.msra.mxu0 %v71
    %97 = vmatprep.subr.mxu0 0.0
    %98 = vmatpush1.msra.mxu0 %v72
    %99 = vmatprep.subr.mxu0 0.0
    %100 = vmatpush1.msra.mxu0 %v73
    %101 = vmatprep.subr.mxu0 0.0
    %102 = vmatpush1.msra.mxu0 %v74
    %103 = vmatprep.subr.mxu0 0.0
    %104 = vmatpush1.msra.mxu0 %v75
    %105 = vmatprep.subr.mxu0 0.0
    %106 = vmatpush1.msra.mxu0 %v76
    %107 = vmatprep.subr.mxu0 0.0
    %108 = vmatpush1.msra.mxu0 %v77
    %109 = vmatprep.subr.mxu0 0.0
    %110 = vmatpush1.msra.mxu0 %v78
    %111 = vmatprep.subr.mxu0 0.0
    %112 = vmatpush1.msra.mxu0 0.0
    %113 = vmatprep.subr.mxu0 0.0
    %114 = vmatpush1.msra.mxu0 0.0
    %115 = vmatprep.subr.mxu0 0.0
    %116 = vmatpush1.msra.mxu0 0.0
    %117 = vmatprep.subr.mxu0 0.0
    %118 = vmatpush1.msra.mxu0 0.0
    %119 = vmatprep.subr.mxu0 0.0
    %120 = vmatpush1.msra.mxu0 0.0
    %121 = vmatprep.subr.mxu0 0.0
    %122 = vmatpush1.msra.mxu0 0.0
    %123 = vmatprep.subr.mxu0 0.0
    %124 = vmatpush1.msra.mxu0 0.0
    %125 = vmatprep.subr.mxu0 0.0
    %126 = vmatpush1.msra.mxu0 0.0
    %127 = vmatprep.subr.mxu0 0.0
    %128 = vmatpush1.msra.mxu0 0.0
    %129 = vmatprep.subr.mxu0 0.0
    %130 = vmatpush1.msra.mxu0 0.0
    %131 = vmatprep.subr.mxu0 0.0
    %132 = vmatpush1.msra.mxu0 0.0
    %133 = vmatprep.subr.mxu0 0.0
    %134 = vmatpush1.msra.mxu0 0.0
    %135 = vmatprep.subr.mxu0 0.0
    %136 = vmatpush1.msra.mxu0 0.0
    %137 = vmatprep.subr.mxu0 0.0
    %138 = vmatpush1.msra.mxu0 0.0
    %139 = vmatprep.subr.mxu0 0.0
    %140 = vmatpush1.msra.mxu0 0.0
    %141 = vmatprep.subr.mxu0 0.0
    %142 = vmatpush1.msra.mxu0 0.0
    %143 = vmatprep.mubr.f32.mxu0 0.0
    %144 = vmatmul.mubr.f32.gmra.mrb[0].mxu0 %v47
    %v145 = vpop.f32.mrb[0].mxu0
    %v146 = vadd.f32 0.0, %v145
    %v147 = vpop.f32.mrb[0].mxu0
    %148 = vmatprep.mubr.f32.mxu0 0.0
    %149 = vmatmul.mubr.f32.gmra.mrb[0].mxu0 %v48
    %v150 = vpop.f32.mrb[0].mxu0
    %v151 = vadd.f32 0.0, %v150
    %v152 = vpop.f32.mrb[0].mxu0
    %153 = vmatprep.mubr.f32.mxu0 0.0
    %154 = vmatmul.mubr.f32.gmra.mrb[0].mxu0 %v49
    %v155 = vpop.f32.mrb[0].mxu0
    %v156 = vadd.f32 0.0, %v155
    %v157 = vpop.f32.mrb[0].mxu0
    %158 = vmatprep.mubr.f32.mxu0 0.0
    %159 = vmatmul.mubr.f32.gmra.mrb[0].mxu0 %v50
    %v160 = vpop.f32.mrb[0].mxu0
    %v161 = vadd.f32 0.0, %v160
    %v162 = vpop.f32.mrb[0].mxu0
    %163 = vmatprep.mubr.f32.mxu0 0.0
    %164 = vmatmul.mubr.f32.gmra.mrb[0].mxu0 %v51
    %v165 = vpop.f32.mrb[0].mxu0
    %v166 = vadd.f32 0.0, %v165
    %v167 = vpop.f32.mrb[0].mxu0
    %168 = vmatprep.mubr.f32.mxu0 0.0
    %169 = vmatmul.mubr.f32.gmra.mrb[0].mxu0 %v52
    %v170 = vpop.f32.mrb[0].mxu0
    %v171 = vadd.f32 0.0, %v170
    %v172 = vpop.f32.mrb[0].mxu0
    %173 = vmatprep.mubr.f32.mxu0 0.0
    %174 = vmatmul.mubr.f32.gmra.mrb[0].mxu0 %v53
    %v175 = vpop.f32.mrb[0].mxu0
    %v176 = vadd.f32 0.0, %v175
    %v177 = vpop.f32.mrb[0].mxu0
    %178 = vmatprep.mubr.f32.mxu0 0.0
    %179 = vmatmul.mubr.f32.gmra.mrb[0].mxu0 %v54
    %v180 = vpop.f32.mrb[0].mxu0
    %v181 = vadd.f32 0.0, %v180
    %v182 = vpop.f32.mrb[0].mxu0
    %183 = vmatprep.mubr.f32.mxu0 0.0
    %184 = vmatmul.mubr.f32.gmra.mrb[0].mxu0 %v55
    %v185 = vpop.f32.mrb[0].mxu0
    %v186 = vadd.f32 0.0, %v185
    %v187 = vpop.f32.mrb[0].mxu0
    %188 = vmatprep.mubr.f32.mxu0 0.0
    %189 = vmatmul.mubr.f32.gmra.mrb[0].mxu0 %v56
    %v190 = vpop.f32.mrb[0].mxu0
    %v191 = vadd.f32 0.0, %v190
    %v192 = vpop.f32.mrb[0].mxu0
    %193 = vmatprep.mubr.f32.mxu0 0.0
    %194 = vmatmul.mubr.f32.gmra.mrb[0].mxu0 %v57
    %v195 = vpop.f32.mrb[0].mxu0
    %v196 = vadd.f32 0.0, %v195
    %v197 = vpop.f32.mrb[0].mxu0
    %198 = vmatprep.mubr.f32.mxu0 0.0
    %199 = vmatmul.mubr.f32.gmra.mrb[0].mxu0 %v58
    %v200 = vpop.f32.mrb[0].mxu0
    %v201 = vadd.f32 0.0, %v200
    %v202 = vpop.f32.mrb[0].mxu0
    %203 = vmatprep.mubr.f32.mxu0 0.0
    %204 = vmatmul.mubr.f32.gmra.mrb[0].mxu0 %v59
    %v205 = vpop.f32.mrb[0].mxu0
    %v206 = vadd.f32 0.0, %v205
    %v207 = vpop.f32.mrb[0].mxu0
    %208 = vmatprep.mubr.f32.mxu0 0.0
    %209 = vmatmul.mubr.f32.gmra.mrb[0].mxu0 %v60
    %v210 = vpop.f32.mrb[0].mxu0
    %v211 = vadd.f32 0.0, %v210
    %v212 = vpop.f32.mrb[0].mxu0
    %213 = vmatprep.mubr.f32.mxu0 0.0
    %214 = vmatmul.mubr.f32.gmra.mrb[0].mxu0 %v61
    %v215 = vpop.f32.mrb[0].mxu0
    %v216 = vadd.f32 0.0, %v215
    %v217 = vpop.f32.mrb[0].mxu0
    %218 = vmatprep.mubr.f32.mxu0 0.0
    %219 = vmatmul.mubr.f32.gmra.mrb[0].mxu0 %v62
    %v220 = vpop.f32.mrb[0].mxu0
    %v221 = vadd.f32 0.0, %v220
    %v222 = vpop.f32.mrb[0].mxu0
    %223 = vdwg.mxu0
    %v224 = vld [vmem:[%s2] sm:$0xff]
    %v225 = vld [vmem:[%s2 + $0x8] sm:$0xff]
    %v226 = vld [vmem:[%s2 + $0x10] sm:$0xff]
    %v227 = vld [vmem:[%s2 + $0x18] sm:$0xff]
    %v228 = vld [vmem:[%s2 + $0x20] sm:$0xff]
    %v229 = vld [vmem:[%s2 + $0x28] sm:$0xff]
    %v230 = vld [vmem:[%s2 + $0x30] sm:$0xff]
    %v231 = vld [vmem:[%s2 + $0x38] sm:$0xff]
    %v232 = vld [vmem:[%s2 + $0x40] sm:$0xff]
    %v233 = vld [vmem:[%s2 + $0x48] sm:$0xff]
    %v234 = vld [vmem:[%s2 + $0x50] sm:$0xff]
    %v235 = vld [vmem:[%s2 + $0x58] sm:$0xff]
    %v236 = vld [vmem:[%s2 + $0x60] sm:$0xff]
    %v237 = vld [vmem:[%s2 + $0x68] sm:$0xff]
    %v238 = vld [vmem:[%s2 + $0x70] sm:$0xff]
    %v239 = vld [vmem:[%s2 + $0x78] sm:$0xff]
    %v240 = vld [vmem:[%s3] sm:$0x1]
    %242 = vset.pattern.permute.xlu0 0
    %243 = vperm.xlu0 %242, %v224
    %v244 = vpop.permute.xlu0 %243
    %247 = vset.pattern.permute.xlu0 0
    %248 = vperm.xlu0 %247, %v225
    %v249 = vpop.permute.xlu0 %248
    %252 = vset.pattern.permute.xlu0 0
    %253 = vperm.xlu0 %252, %v226
    %v254 = vpop.permute.xlu0 %253
    %257 = vset.pattern.permute.xlu0 0
    %258 = vperm.xlu0 %257, %v227
    %v259 = vpop.permute.xlu0 %258
    %262 = vset.pattern.permute.xlu0 0
    %263 = vperm.xlu0 %262, %v228
    %v264 = vpop.permute.xlu0 %263
    %267 = vset.pattern.permute.xlu0 0
    %268 = vperm.xlu0 %267, %v229
    %v269 = vpop.permute.xlu0 %268
    %272 = vset.pattern.permute.xlu0 0
    %273 = vperm.xlu0 %272, %v230
    %v274 = vpop.permute.xlu0 %273
    %277 = vset.pattern.permute.xlu0 0
    %278 = vperm.xlu0 %277, %v231
    %v279 = vpop.permute.xlu0 %278
    %282 = vset.pattern.permute.xlu0 0
    %283 = vperm.xlu0 %282, %v232
    %v284 = vpop.permute.xlu0 %283
    %287 = vset.pattern.permute.xlu0 0
    %288 = vperm.xlu0 %287, %v233
    %v289 = vpop.permute.xlu0 %288
    %292 = vset.pattern.permute.xlu0 0
    %293 = vperm.xlu0 %292, %v234
    %v294 = vpop.permute.xlu0 %293
    %297 = vset.pattern.permute.xlu0 0
    %298 = vperm.xlu0 %297, %v235
    %v299 = vpop.permute.xlu0 %298
    %302 = vset.pattern.permute.xlu0 0
    %303 = vperm.xlu0 %302, %v236
    %v304 = vpop.permute.xlu0 %303
    %307 = vset.pattern.permute.xlu0 0
    %308 = vperm.xlu0 %307, %v237
    %v309 = vpop.permute.xlu0 %308
    %312 = vset.pattern.permute.xlu0 0
    %313 = vperm.xlu0 %312, %v238
    %v314 = vpop.permute.xlu0 %313
    %317 = vset.pattern.permute.xlu0 0
    %318 = vperm.xlu0 %317, %v239
    %v319 = vpop.permute.xlu0 %318
    %v322 = vlaneseq
    %v323 = vshrl.u32 %v322, 7
    %v324 = vsub.s32 0, %v323
    %v325 = vrot.slane %v240, %v324
    %v327 = vadd.f32 %v244, %v325
    %v328 = vadd.f32 %v249, %v325
    %v329 = vadd.f32 %v254, %v325
    %v330 = vadd.f32 %v259, %v325
    %v331 = vadd.f32 %v264, %v325
    %v332 = vadd.f32 %v269, %v325
    %v333 = vadd.f32 %v274, %v325
    %v334 = vadd.f32 %v279, %v325
    %v335 = vadd.f32 %v284, %v325
    %v336 = vadd.f32 %v289, %v325
    %v337 = vadd.f32 %v294, %v325
    %v338 = vadd.f32 %v299, %v325
    %v339 = vadd.f32 %v304, %v325
    %v340 = vadd.f32 %v309, %v325
    %v341 = vadd.f32 %v314, %v325
    %v342 = vadd.f32 %v319, %v325
    %v343 = vmul.f32 %v146, 2.0
    %v344 = vmul.f32 %v151, 2.0
    %v345 = vmul.f32 %v156, 2.0
    %v346 = vmul.f32 %v161, 2.0
    %v347 = vmul.f32 %v166, 2.0
    %v348 = vmul.f32 %v171, 2.0
    %v349 = vmul.f32 %v176, 2.0
    %v350 = vmul.f32 %v181, 2.0
    %v351 = vmul.f32 %v186, 2.0
    %v352 = vmul.f32 %v191, 2.0
    %v353 = vmul.f32 %v196, 2.0
    %v354 = vmul.f32 %v201, 2.0
    %v355 = vmul.f32 %v206, 2.0
    %v356 = vmul.f32 %v211, 2.0
    %v357 = vmul.f32 %v216, 2.0
    %v358 = vmul.f32 %v221, 2.0
    %v359 = vsub.f32 %v327, %v343
    %v360 = vsub.f32 %v328, %v344
    %v361 = vsub.f32 %v329, %v345
    %v362 = vsub.f32 %v330, %v346
    %v363 = vsub.f32 %v331, %v347
    %v364 = vsub.f32 %v332, %v348
    %v365 = vsub.f32 %v333, %v349
    %v366 = vsub.f32 %v334, %v350
    %v367 = vsub.f32 %v335, %v351
    %v368 = vsub.f32 %v336, %v352
    %v369 = vsub.f32 %v337, %v353
    %v370 = vsub.f32 %v338, %v354
    %v371 = vsub.f32 %v339, %v355
    %v372 = vsub.f32 %v340, %v356
    %v373 = vsub.f32 %v341, %v357
    %v374 = vsub.f32 %v342, %v358
    %v375 = vmax.f32 %v359, 0.0
    %v376 = vmax.f32 %v360, 0.0
    %v377 = vmax.f32 %v361, 0.0
    %v378 = vmax.f32 %v362, 0.0
    %v379 = vmax.f32 %v363, 0.0
    %v380 = vmax.f32 %v364, 0.0
    %v381 = vmax.f32 %v365, 0.0
    %v382 = vmax.f32 %v366, 0.0
    %v383 = vmax.f32 %v367, 0.0
    %v384 = vmax.f32 %v368, 0.0
    %v385 = vmax.f32 %v369, 0.0
    %v386 = vmax.f32 %v370, 0.0
    %v387 = vmax.f32 %v371, 0.0
    %v388 = vmax.f32 %v372, 0.0
    %v389 = vmax.f32 %v373, 0.0
    %v390 = vmax.f32 %v374, 0.0
    %v391 = vmul.f32 %v375, -0.25
    %v392 = vmul.f32 %v376, -0.25
    %v393 = vmul.f32 %v377, -0.25
    %v394 = vmul.f32 %v378, -0.25
    %v395 = vmul.f32 %v379, -0.25
    %v396 = vmul.f32 %v380, -0.25
    %v397 = vmul.f32 %v381, -0.25
    %v398 = vmul.f32 %v382, -0.25
    %v399 = vmul.f32 %v383, -0.25
    %v400 = vmul.f32 %v384, -0.25
    %v401 = vmul.f32 %v385, -0.25
    %v402 = vmul.f32 %v386, -0.25
    %v403 = vmul.f32 %v387, -0.25
    %v404 = vmul.f32 %v388, -0.25
    %v405 = vmul.f32 %v389, -0.25
    %v406 = vmul.f32 %v390, -0.25
    %v407 = vmul.f32 %v391, 1.442695
    %v408 = vpow.pop %v407
    %v409 = vmul.f32 %v392, 1.442695
    %v410 = vpow.pop %v409
    %v411 = vmul.f32 %v393, 1.442695
    %v412 = vpow.pop %v411
    %v413 = vmul.f32 %v394, 1.442695
    %v414 = vpow.pop %v413
    %v415 = vmul.f32 %v395, 1.442695
    %v416 = vpow.pop %v415
    %v417 = vmul.f32 %v396, 1.442695
    %v418 = vpow.pop %v417
    %v419 = vmul.f32 %v397, 1.442695
    %v420 = vpow.pop %v419
    %v421 = vmul.f32 %v398, 1.442695
    %v422 = vpow.pop %v421
    %v423 = vmul.f32 %v399, 1.442695
    %v424 = vpow.pop %v423
    %v425 = vmul.f32 %v400, 1.442695
    %v426 = vpow.pop %v425
    %v427 = vmul.f32 %v401, 1.442695
    %v428 = vpow.pop %v427
    %v429 = vmul.f32 %v402, 1.442695
    %v430 = vpow.pop %v429
    %v431 = vmul.f32 %v403, 1.442695
    %v432 = vpow.pop %v431
    %v433 = vmul.f32 %v404, 1.442695
    %v434 = vpow.pop %v433
    %v435 = vmul.f32 %v405, 1.442695
    %v436 = vpow.pop %v435
    %v437 = vmul.f32 %v406, 1.442695
    %v438 = vpow.pop %v437
    %v439 = vadd.f32 %v408, 0.0
    %v440 = vadd.f32 %v410, 0.0
    %v441 = vadd.f32 %v412, 0.0
    %v442 = vadd.f32 %v414, 0.0
    %v443 = vadd.f32 %v416, 0.0
    %v444 = vadd.f32 %v418, 0.0
    %v445 = vadd.f32 %v420, 0.0
    %v446 = vadd.f32 %v422, 0.0
    %v447 = vadd.f32 %v424, 0.0
    %v448 = vadd.f32 %v426, 0.0
    %v449 = vadd.f32 %v428, 0.0
    %v450 = vadd.f32 %v430, 0.0
    %v451 = vadd.f32 %v432, 0.0
    %v452 = vadd.f32 %v434, 0.0
    %v453 = vadd.f32 %v436, 0.0
    %v454 = vadd.f32 %v438, 0.0
    %v455 = vmul.f32 %v408, %v408
    %v456 = vmul.f32 %v410, %v410
    %v457 = vmul.f32 %v412, %v412
    %v458 = vmul.f32 %v414, %v414
    %v459 = vmul.f32 %v416, %v416
    %v460 = vmul.f32 %v418, %v418
    %v461 = vmul.f32 %v420, %v420
    %v462 = vmul.f32 %v422, %v422
    %v463 = vmul.f32 %v424, %v424
    %v464 = vmul.f32 %v426, %v426
    %v465 = vmul.f32 %v428, %v428
    %v466 = vmul.f32 %v430, %v430
    %v467 = vmul.f32 %v432, %v432
    %v468 = vmul.f32 %v434, %v434
    %v469 = vmul.f32 %v436, %v436
    %v470 = vmul.f32 %v438, %v438
    %v471 = vadd.f32 %v439, %v455
    %v472 = vadd.f32 %v440, %v456
    %v473 = vadd.f32 %v441, %v457
    %v474 = vadd.f32 %v442, %v458
    %v475 = vadd.f32 %v443, %v459
    %v476 = vadd.f32 %v444, %v460
    %v477 = vadd.f32 %v445, %v461
    %v478 = vadd.f32 %v446, %v462
    %v479 = vadd.f32 %v447, %v463
    %v480 = vadd.f32 %v448, %v464
    %v481 = vadd.f32 %v449, %v465
    %v482 = vadd.f32 %v450, %v466
    %v483 = vadd.f32 %v451, %v467
    %v484 = vadd.f32 %v452, %v468
    %v485 = vadd.f32 %v453, %v469
    %v486 = vadd.f32 %v454, %v470
    %v487 = vmul.f32 %v455, %v455
    %v488 = vmul.f32 %v456, %v456
    %v489 = vmul.f32 %v457, %v457
    %v490 = vmul.f32 %v458, %v458
    %v491 = vmul.f32 %v459, %v459
    %v492 = vmul.f32 %v460, %v460
    %v493 = vmul.f32 %v461, %v461
    %v494 = vmul.f32 %v462, %v462
    %v495 = vmul.f32 %v463, %v463
    %v496 = vmul.f32 %v464, %v464
    %v497 = vmul.f32 %v465, %v465
    %v498 = vmul.f32 %v466, %v466
    %v499 = vmul.f32 %v467, %v467
    %v500 = vmul.f32 %v468, %v468
    %v501 = vmul.f32 %v469, %v469
    %v502 = vmul.f32 %v470, %v470
    %v503 = vadd.f32 %v471, %v487
    %v504 = vadd.f32 %v472, %v488
    %v505 = vadd.f32 %v473, %v489
    %v506 = vadd.f32 %v474, %v490
    %v507 = vadd.f32 %v475, %v491
    %v508 = vadd.f32 %v476, %v492
    %v509 = vadd.f32 %v477, %v493
    %v510 = vadd.f32 %v478, %v494
    %v511 = vadd.f32 %v479, %v495
    %v512 = vadd.f32 %v480, %v496
    %v513 = vadd.f32 %v481, %v497
    %v514 = vadd.f32 %v482, %v498
    %v515 = vadd.f32 %v483, %v499
    %v516 = vadd.f32 %v484, %v500
    %v517 = vadd.f32 %v485, %v501
    %v518 = vadd.f32 %v486, %v502
    %v519 = vmul.f32 %v487, %v487
    %v520 = vmul.f32 %v488, %v488
    %v521 = vmul.f32 %v489, %v489
    %v522 = vmul.f32 %v490, %v490
    %v523 = vmul.f32 %v491, %v491
    %v524 = vmul.f32 %v492, %v492
    %v525 = vmul.f32 %v493, %v493
    %v526 = vmul.f32 %v494, %v494
    %v527 = vmul.f32 %v495, %v495
    %v528 = vmul.f32 %v496, %v496
    %v529 = vmul.f32 %v497, %v497
    %v530 = vmul.f32 %v498, %v498
    %v531 = vmul.f32 %v499, %v499
    %v532 = vmul.f32 %v500, %v500
    %v533 = vmul.f32 %v501, %v501
    %v534 = vmul.f32 %v502, %v502
    %v535 = vadd.f32 %v503, %v519
    %v536 = vadd.f32 %v504, %v520
    %v537 = vadd.f32 %v505, %v521
    %v538 = vadd.f32 %v506, %v522
    %v539 = vadd.f32 %v507, %v523
    %v540 = vadd.f32 %v508, %v524
    %v541 = vadd.f32 %v509, %v525
    %v542 = vadd.f32 %v510, %v526
    %v543 = vadd.f32 %v511, %v527
    %v544 = vadd.f32 %v512, %v528
    %v545 = vadd.f32 %v513, %v529
    %v546 = vadd.f32 %v514, %v530
    %v547 = vadd.f32 %v515, %v531
    %v548 = vadd.f32 %v516, %v532
    %v549 = vadd.f32 %v517, %v533
    %v550 = vadd.f32 %v518, %v534
    %v551 = vmul.f32 %v519, %v519
    %v552 = vmul.f32 %v520, %v520
    %v553 = vmul.f32 %v521, %v521
    %v554 = vmul.f32 %v522, %v522
    %v555 = vmul.f32 %v523, %v523
    %v556 = vmul.f32 %v524, %v524
    %v557 = vmul.f32 %v525, %v525
    %v558 = vmul.f32 %v526, %v526
    %v559 = vmul.f32 %v527, %v527
    %v560 = vmul.f32 %v528, %v528
    %v561 = vmul.f32 %v529, %v529
    %v562 = vmul.f32 %v530, %v530
    %v563 = vmul.f32 %v531, %v531
    %v564 = vmul.f32 %v532, %v532
    %v565 = vmul.f32 %v533, %v533
    %v566 = vmul.f32 %v534, %v534
    %v567 = vadd.f32 %v535, %v551
    %v568 = vadd.f32 %v536, %v552
    %v569 = vadd.f32 %v537, %v553
    %v570 = vadd.f32 %v538, %v554
    %v571 = vadd.f32 %v539, %v555
    %v572 = vadd.f32 %v540, %v556
    %v573 = vadd.f32 %v541, %v557
    %v574 = vadd.f32 %v542, %v558
    %v575 = vadd.f32 %v543, %v559
    %v576 = vadd.f32 %v544, %v560
    %v577 = vadd.f32 %v545, %v561
    %v578 = vadd.f32 %v546, %v562
    %v579 = vadd.f32 %v547, %v563
    %v580 = vadd.f32 %v548, %v564
    %v581 = vadd.f32 %v549, %v565
    %v582 = vadd.f32 %v550, %v566
    %p583 = scmp.eq.s32.totalorder 0, 0
    %s584 = scalar_select %p583, 1.0, 2.0
    %v585 = vld [vmem:[#allocation2] sm:$0xff]
    %v586 = vld [vmem:[#allocation2 + $0x8] sm:$0xff]
    %v587 = vld [vmem:[#allocation2 + $0x10] sm:$0xff]
    %v588 = vld [vmem:[#allocation2 + $0x18] sm:$0xff]
    %v589 = vld [vmem:[#allocation2 + $0x20] sm:$0xff]
    %v590 = vld [vmem:[#allocation2 + $0x28] sm:$0xff]
    %v591 = vld [vmem:[#allocation2 + $0x30] sm:$0xff]
    %v592 = vld [vmem:[#allocation2 + $0x38] sm:$0xff]
    %v593 = vld [vmem:[#allocation2 + $0x40] sm:$0xff]
    %v594 = vld [vmem:[#allocation2 + $0x48] sm:$0xff]
    %v595 = vld [vmem:[#allocation2 + $0x50] sm:$0xff]
    %v596 = vld [vmem:[#allocation2 + $0x58] sm:$0xff]
    %v597 = vld [vmem:[#allocation2 + $0x60] sm:$0xff]
    %v598 = vld [vmem:[#allocation2 + $0x68] sm:$0xff]
    %v599 = vld [vmem:[#allocation2 + $0x70] sm:$0xff]
    %v600 = vld [vmem:[#allocation2 + $0x78] sm:$0xff]
    %v601 = vstv %s584
    %v602 = vmul.f32 %v601, %v567
    %v603 = vmul.f32 %v601, %v568
    %v604 = vmul.f32 %v601, %v569
    %v605 = vmul.f32 %v601, %v570
    %v606 = vmul.f32 %v601, %v571
    %v607 = vmul.f32 %v601, %v572
    %v608 = vmul.f32 %v601, %v573
    %v609 = vmul.f32 %v601, %v574
    %v610 = vmul.f32 %v601, %v575
    %v611 = vmul.f32 %v601, %v576
    %v612 = vmul.f32 %v601, %v577
    %v613 = vmul.f32 %v601, %v578
    %v614 = vmul.f32 %v601, %v579
    %v615 = vmul.f32 %v601, %v580
    %v616 = vmul.f32 %v601, %v581
    %v617 = vmul.f32 %v601, %v582
    %v618 = vld [vmem:[%s5] sm:$0x1]
    %v620 = vlaneseq
    %v621 = vshrl.u32 %v620, 7
    %v622 = vsub.s32 0, %v621
    %v623 = vrot.slane %v618, %v622
    %v625 = vmul.f32 %v602, %v623
    %v626 = vmul.f32 %v603, %v623
    %v627 = vmul.f32 %v604, %v623
    %v628 = vmul.f32 %v605, %v623
    %v629 = vmul.f32 %v606, %v623
    %v630 = vmul.f32 %v607, %v623
    %v631 = vmul.f32 %v608, %v623
    %v632 = vmul.f32 %v609, %v623
    %v633 = vmul.f32 %v610, %v623
    %v634 = vmul.f32 %v611, %v623
    %v635 = vmul.f32 %v612, %v623
    %v636 = vmul.f32 %v613, %v623
    %v637 = vmul.f32 %v614, %v623
    %v638 = vmul.f32 %v615, %v623
    %v639 = vmul.f32 %v616, %v623
    %v640 = vmul.f32 %v617, %v623
    %v641 = vadd.f32 %v585, %v625
    %v642 = vadd.f32 %v586, %v626
    %v643 = vadd.f32 %v587, %v627
    %v644 = vadd.f32 %v588, %v628
    %v645 = vadd.f32 %v589, %v629
    %v646 = vadd.f32 %v590, %v630
    %v647 = vadd.f32 %v591, %v631
    %v648 = vadd.f32 %v592, %v632
    %v649 = vadd.f32 %v593, %v633
    %v650 = vadd.f32 %v594, %v634
    %v651 = vadd.f32 %v595, %v635
    %v652 = vadd.f32 %v596, %v636
    %v653 = vadd.f32 %v597, %v637
    %v654 = vadd.f32 %v598, %v638
    %v655 = vadd.f32 %v599, %v639
    %v656 = vadd.f32 %v600, %v640
    %657 = vst [vmem:[#allocation2] sm:$0xff] %v641
    %658 = vst [vmem:[#allocation2 + $0x8] sm:$0xff] %v642
    %659 = vst [vmem:[#allocation2 + $0x10] sm:$0xff] %v643
    %660 = vst [vmem:[#allocation2 + $0x18] sm:$0xff] %v644
    %661 = vst [vmem:[#allocation2 + $0x20] sm:$0xff] %v645
    %662 = vst [vmem:[#allocation2 + $0x28] sm:$0xff] %v646
    %663 = vst [vmem:[#allocation2 + $0x30] sm:$0xff] %v647
    %664 = vst [vmem:[#allocation2 + $0x38] sm:$0xff] %v648
    %665 = vst [vmem:[#allocation2 + $0x40] sm:$0xff] %v649
    %666 = vst [vmem:[#allocation2 + $0x48] sm:$0xff] %v650
    %667 = vst [vmem:[#allocation2 + $0x50] sm:$0xff] %v651
    %668 = vst [vmem:[#allocation2 + $0x58] sm:$0xff] %v652
    %669 = vst [vmem:[#allocation2 + $0x60] sm:$0xff] %v653
    %670 = vst [vmem:[#allocation2 + $0x68] sm:$0xff] %v654
    %671 = vst [vmem:[#allocation2 + $0x70] sm:$0xff] %v655
    %672 = vst [vmem:[#allocation2 + $0x78] sm:$0xff] %v656
  $region33: #{mmd_loss.1} parent=0 // pred_fallthru
    _
  // Predicated region
  $region34: #{mmd_loss.1} parent=0 // pred_check
    %p673 = pneg %p23
  $region35: #{mmd_loss.1} parent=0 // pred_check_branch
    %675 = sbr.rel (%p673) target = $region37
  $region36: #{mmd_loss.1} parent=0 // pred_region
    %v676 = vld [vmem:[%s4] sm:$0xff]
    %v677 = vld [vmem:[%s4 + $0x8] sm:$0xff]
    %v678 = vld [vmem:[%s4 + $0x10] sm:$0xff]
    %v679 = vld [vmem:[%s4 + $0x18] sm:$0xff]
    %v680 = vld [vmem:[%s4 + $0x20] sm:$0xff]
    %v681 = vld [vmem:[%s4 + $0x28] sm:$0xff]
    %v682 = vld [vmem:[%s4 + $0x30] sm:$0xff]
    %v683 = vld [vmem:[%s4 + $0x38] sm:$0xff]
    %v684 = vld [vmem:[%s4 + $0x40] sm:$0xff]
    %v685 = vld [vmem:[%s4 + $0x48] sm:$0xff]
    %v686 = vld [vmem:[%s4 + $0x50] sm:$0xff]
    %v687 = vld [vmem:[%s4 + $0x58] sm:$0xff]
    %v688 = vld [vmem:[%s4 + $0x60] sm:$0xff]
    %v689 = vld [vmem:[%s4 + $0x68] sm:$0xff]
    %v690 = vld [vmem:[%s4 + $0x70] sm:$0xff]
    %v691 = vld [vmem:[%s4 + $0x78] sm:$0xff]
    %v692 = vld [vmem:[#allocation2] sm:$0xff]
    %v693 = vld [vmem:[#allocation2 + $0x8] sm:$0xff]
    %v694 = vld [vmem:[#allocation2 + $0x10] sm:$0xff]
    %v695 = vld [vmem:[#allocation2 + $0x18] sm:$0xff]
    %v696 = vld [vmem:[#allocation2 + $0x20] sm:$0xff]
    %v697 = vld [vmem:[#allocation2 + $0x28] sm:$0xff]
    %v698 = vld [vmem:[#allocation2 + $0x30] sm:$0xff]
    %v699 = vld [vmem:[#allocation2 + $0x38] sm:$0xff]
    %v700 = vld [vmem:[#allocation2 + $0x40] sm:$0xff]
    %v701 = vld [vmem:[#allocation2 + $0x48] sm:$0xff]
    %v702 = vld [vmem:[#allocation2 + $0x50] sm:$0xff]
    %v703 = vld [vmem:[#allocation2 + $0x58] sm:$0xff]
    %v704 = vld [vmem:[#allocation2 + $0x60] sm:$0xff]
    %v705 = vld [vmem:[#allocation2 + $0x68] sm:$0xff]
    %v706 = vld [vmem:[#allocation2 + $0x70] sm:$0xff]
    %v707 = vld [vmem:[#allocation2 + $0x78] sm:$0xff]
    %708 = vadd.xlane.f32.xlu0 %v692
    %v709 = vpop.xlane.xlu0 %708
    %710 = vadd.xlane.f32.xlu0 %v693
    %v711 = vpop.xlane.xlu0 %710
    %712 = vadd.xlane.f32.xlu0 %v694
    %v713 = vpop.xlane.xlu0 %712
    %714 = vadd.xlane.f32.xlu0 %v695
    %v715 = vpop.xlane.xlu0 %714
    %716 = vadd.xlane.f32.xlu0 %v696
    %v717 = vpop.xlane.xlu0 %716
    %718 = vadd.xlane.f32.xlu0 %v697
    %v719 = vpop.xlane.xlu0 %718
    %720 = vadd.xlane.f32.xlu0 %v698
    %v721 = vpop.xlane.xlu0 %720
    %722 = vadd.xlane.f32.xlu0 %v699
    %v723 = vpop.xlane.xlu0 %722
    %724 = vadd.xlane.f32.xlu0 %v700
    %v725 = vpop.xlane.xlu0 %724
    %726 = vadd.xlane.f32.xlu0 %v701
    %v727 = vpop.xlane.xlu0 %726
    %728 = vadd.xlane.f32.xlu0 %v702
    %v729 = vpop.xlane.xlu0 %728
    %730 = vadd.xlane.f32.xlu0 %v703
    %v731 = vpop.xlane.xlu0 %730
    %732 = vadd.xlane.f32.xlu0 %v704
    %v733 = vpop.xlane.xlu0 %732
    %734 = vadd.xlane.f32.xlu0 %v705
    %v735 = vpop.xlane.xlu0 %734
    %736 = vadd.xlane.f32.xlu0 %v706
    %v737 = vpop.xlane.xlu0 %736
    %738 = vadd.xlane.f32.xlu0 %v707
    %v739 = vpop.xlane.xlu0 %738
    %v740 = vmul.f32 %v676, %v709
    %v741 = vmul.f32 %v677, %v711
    %v742 = vmul.f32 %v678, %v713
    %v743 = vmul.f32 %v679, %v715
    %v744 = vmul.f32 %v680, %v717
    %v745 = vmul.f32 %v681, %v719
    %v746 = vmul.f32 %v682, %v721
    %v747 = vmul.f32 %v683, %v723
    %v748 = vmul.f32 %v684, %v725
    %v749 = vmul.f32 %v685, %v727
    %v750 = vmul.f32 %v686, %v729
    %v751 = vmul.f32 %v687, %v731
    %v752 = vmul.f32 %v688, %v733
    %v753 = vmul.f32 %v689, %v735
    %v754 = vmul.f32 %v690, %v737
    %v755 = vmul.f32 %v691, %v739
    %vm756 = vcmask 7168
    %757 = vst.msk [vmem:[%s6] sm:$0xff] %vm756, %v740
    %758 = vst.msk [vmem:[%s6 + $0x8] sm:$0xff] %vm756, %v741
    %759 = vst.msk [vmem:[%s6 + $0x10] sm:$0xff] %vm756, %v742
    %760 = vst.msk [vmem:[%s6 + $0x18] sm:$0xff] %vm756, %v743
    %761 = vst.msk [vmem:[%s6 + $0x20] sm:$0xff] %vm756, %v744
    %762 = vst.msk [vmem:[%s6 + $0x28] sm:$0xff] %vm756, %v745
    %763 = vst.msk [vmem:[%s6 + $0x30] sm:$0xff] %vm756, %v746
    %764 = vst.msk [vmem:[%s6 + $0x38] sm:$0xff] %vm756, %v747
    %765 = vst.msk [vmem:[%s6 + $0x40] sm:$0xff] %vm756, %v748
    %766 = vst.msk [vmem:[%s6 + $0x48] sm:$0xff] %vm756, %v749
    %767 = vst.msk [vmem:[%s6 + $0x50] sm:$0xff] %vm756, %v750
    %768 = vst.msk [vmem:[%s6 + $0x58] sm:$0xff] %vm756, %v751
    %769 = vst.msk [vmem:[%s6 + $0x60] sm:$0xff] %vm756, %v752
    %770 = vst.msk [vmem:[%s6 + $0x68] sm:$0xff] %vm756, %v753
    %771 = vst.msk [vmem:[%s6 + $0x70] sm:$0xff] %vm756, %v754
    %772 = vst.msk [vmem:[%s6 + $0x78] sm:$0xff] %vm756, %v755
  $region37: #{mmd_loss.1} parent=0 // pred_fallthru
    _
  // Predicated region
  $region38: #{mmd_loss.1} parent=0 // pred_check
    _
  $region39: #{mmd_loss.1} parent=0 // pred_check_branch
    %774 = sbr.rel (0) target = $region41
  $region40: #{mmd_loss.1} parent=0 // pred_region
    _
  $region41: #{mmd_loss.1} parent=0 // pred_fallthru
    _
  // Predicated region
  $region42: #{mmd_loss.1} parent=0 // pred_check
    _
  $region43: #{mmd_loss.1} parent=0 // pred_check_branch
    %776 = sbr.rel (0) target = $region45
  $region44: #{mmd_loss.1} parent=0 // pred_region
    _
  $region45: #{mmd_loss.1} parent=0 // pred_fallthru
    _

</llo_original>
